<compile_context>
chip_gen: v7x
topology: tpu7x:2x2x1
jax: 0.10.0
libtpu: 0.0.40
codegen_flags: <defaults>
</compile_context>

<pallas_src>
import functools

import jax
import jax.numpy as jnp
from jax.experimental import pallas as pl
from jax.experimental.pallas import tpu as pltpu

NUM_CLASSES = 2
ALPHA = 0.25
GAMMA = 2.0            # exploited as an explicit square inside the kernel
IGNORE_INDEX = -100

LANES = 128            # vreg lane width
SUBLANES = 8           # f32 sublane height
CHUNK = 256            # rows per in-kernel accumulation chunk (32 vregs per stream)
MIN_STEPS = 8          # keep >= this many grid steps on big inputs (v7x: 2 TCs + pipelining)


def _make_kernel(tile_rows: int, chunk: int, hw: int, needs_mask: bool):
    """x0_ref/x1_ref: (tile_rows,128) logit planes; t_ref: (tile_rows,128) int targets;
    part_ref: (8,128) (or (1,128) for tiny ragged tiles) f32 partial sum for this step."""
    n_chunks = tile_rows // chunk                  # exact by construction (see wrapper)
    fold8 = (chunk % SUBLANES == 0)                # (8,128)-fold path vs tiny-tile path

    def kernel(x0_ref, x1_ref, t_ref, part_ref):
        row0 = pl.program_id(1) * tile_rows
        if needs_mask:
            base_pix = (jax.lax.broadcasted_iota(jnp.int32, (chunk, LANES), 0) * LANES
                        + jax.lax.broadcasted_iota(jnp.int32, (chunk, LANES), 1))

        def chunk_body(ci, acc):
            r = ci * chunk
            x0 = x0_ref[pl.ds(r, chunk), :].astype(jnp.float32)
            x1 = x1_ref[pl.ds(r, chunk), :].astype(jnp.float32)
            t = t_ref[pl.ds(r, chunk), :]

            not_ignored = t != IGNORE_INDEX
            if needs_mask:
                in_range = (base_pix + (row0 + r) * LANES) < hw
                valid = in_range & not_ignored
            else:
                valid = not_ignored

            # Double 2-class softmax collapsed analytically:
            #   valid pixel:   p_t = sigmoid(+/- tanh((x0 - x1)/2))
            #   ignored pixel: p_t = 0.5   (masked probs -> [0.5, 0.5], target masked to 0)
            s = jnp.where(valid, jnp.tanh(0.5 * (x0 - x1)), 0.0)
            z = jnp.where(t == 1, -s, s)
            # With e = exp(-z):  p_t = 1/(1+e),  loss = a*(1-p_t)^2*(-log p_t)
            #                                         = a * e^2 * log(1+e) / (1+e)^2
            e = jnp.exp(-z)                         # |z| < 1 -> e in (0.36, 2.72): well conditioned
            d = 1.0 + e
            d2 = d * d
            inv = pl.reciprocal(d2, approx=True)    # EUP rcp: divide stays off the VALU
            inv = inv * (2.0 - d2 * inv)            # one Newton step -> ~f32-exact
            loss = (ALPHA * (e * e)) * jnp.log(d) * inv
            if needs_mask:
                loss = jnp.where(in_range, loss, 0.0)

            if fold8:
                # Fold (chunk,128) -> (8,128) with plain vector adds (native (8,128) tiles,
                # no cross-lane/cross-sublane XLU work in the steady state).
                return acc + jnp.sum(
                    loss.reshape(chunk // SUBLANES, SUBLANES, LANES), axis=0)
            # Tiny ragged tile (< 8 rows-per-image remainder): single sublane reduce.
            return acc + jnp.sum(loss, axis=0, keepdims=True)

        acc0 = jnp.zeros((SUBLANES if fold8 else 1, LANES), jnp.float32)
        part_ref[...] = jax.lax.fori_loop(0, n_chunks, chunk_body, acc0, unroll=True)

    return kernel


@functools.partial(jax.jit, static_argnames=("tile_rows",))
def focal_loss_tpu(pred, target, *, tile_rows=2048):
    """pred: (B, 2, H, W) float logits (f32 or bf16); target: (B, H, W) integer class ids
    (-100 = ignore).  Returns the scalar mean focal loss (reduction='mean', weight=None)."""
    b, c, h, w = pred.shape
    assert c == NUM_CLASSES, "reference code hardcodes 2 classes"
    hw = h * w
    n = b * hw

    # Targets are read in whatever integer width the caller provides (int8/int16 shrink the
    # stream by 4x/2x); only non-integer dtypes get a cast.
    if not jnp.issubdtype(target.dtype, jnp.integer):
        target = target.astype(jnp.int32)

    # Lane-dense layout without copies: (B,2,H,W) -> (B,2,rows,128) is a free reshape when
    # H*W is a multiple of 128; both class planes are read straight out of `pred` via two
    # BlockSpecs on the same buffer (squeezed class dim).  Target keeps its own buffer.
    if hw % LANES == 0:
        rows = hw // LANES
        pred4 = pred.reshape(b, c, rows, LANES)
        tgt3 = target.reshape(b, rows, LANES)
    else:
        # TODO(synk): H*W not a multiple of 128 falls back to one padded copy of pred/target.
        rows = pl.cdiv(hw, LANES)
        pad = rows * LANES - hw
        pred4 = jnp.pad(pred.reshape(b, c, hw),
                        ((0, 0), (0, 0), (0, pad))).reshape(b, c, rows, LANES)
        tgt3 = jnp.pad(target.reshape(b, hw),
                       ((0, 0), (0, pad))).reshape(b, rows, LANES)

    # Row-tile sizing: big tiles amortize per-step overhead; tiles larger than CHUNK are
    # CHUNK-aligned so the in-kernel chunk loop never slices past the VMEM block.  On large
    # inputs the tile is capped so the parallel grid keeps >= MIN_STEPS steps (v7x megacore +
    # pipeline overlap).  v5e/v6e (128 MiB VMEM) can pass a larger tile_rows explicitly.
    if rows <= CHUNK:
        tile_rows = rows                               # full-extent block (always legal)
    else:
        tile_rows = max(CHUNK, (min(tile_rows, rows) // CHUNK) * CHUNK)
        if b * rows >= MIN_STEPS * CHUNK:
            cap = max(CHUNK, (b * rows // MIN_STEPS) // CHUNK * CHUNK)
            tile_rows = min(tile_rows, cap)
    chunk = min(CHUNK, tile_rows)
    nt = pl.cdiv(rows, tile_rows)
    needs_mask = (hw % LANES != 0) or (rows % tile_rows != 0)
    out_rows = SUBLANES if chunk % SUBLANES == 0 else 1

    # ~2x double-buffered (2 logit planes + target); defaults stay well inside v7x's
    # 32 MiB scoped / 64 MiB physical VMEM.
    bytes_per_row = LANES * (2 * pred.dtype.itemsize + tgt3.dtype.itemsize)
    vmem_limit = int(min(64 << 20, max(16 << 20, 2 * tile_rows * bytes_per_row + (4 << 20))))

    kernel = _make_kernel(tile_rows, chunk, hw, needs_mask)

    partials = pl.pallas_call(
        kernel,
        out_shape=jax.ShapeDtypeStruct((b, nt, out_rows, LANES), jnp.float32),
        grid=(b, nt),
        in_specs=[
            pl.BlockSpec((None, None, tile_rows, LANES), lambda bi, ri: (bi, 0, ri, 0)),
            pl.BlockSpec((None, None, tile_rows, LANES), lambda bi, ri: (bi, 1, ri, 0)),
            pl.BlockSpec((None, tile_rows, LANES), lambda bi, ri: (bi, ri, 0)),
        ],
        out_specs=pl.BlockSpec((None, None, out_rows, LANES), lambda bi, ri: (bi, ri, 0, 0)),
        compiler_params=pltpu.CompilerParams(
            dimension_semantics=("parallel", "parallel"),
            vmem_limit_bytes=vmem_limit,
        ),
    )(pred4, pred4, tgt3)

    # reduction='mean': divide by ALL B*H*W pixels (ignored pixels included, as in torch).
    return jnp.sum(partials) / n


def _focal_loss_ref(pred, target):
    """Pure-JAX reference mirroring the PyTorch code path (for verification)."""
    b, c, h, w = pred.shape
    p = jax.nn.softmax(pred.astype(jnp.float32), axis=1)        # softmax #1 (forward)
    p = p.reshape(b, c, h * w)
    t = target.reshape(b, h * w)
    mask = t != IGNORE_INDEX
    p = p * mask.astype(p.dtype)[:, None, :]
    t = jnp.where(mask, t, 0)
    p = jax.nn.softmax(p, axis=1)                               # softmax #2 (focal_loss)
    onehot = jnp.transpose(jnp.eye(NUM_CLASSES, dtype=p.dtype)[t], (0, 2, 1))
    fl = ALPHA * jnp.power(1.0 - p, GAMMA) * (-jnp.log(p)) * onehot
    return jnp.mean(jnp.sum(fl, axis=1))


if __name__ == "__main__":
    key = jax.random.PRNGKey(0)
    keys = jax.random.split(key, 12)

    def make_case(kp, kt, km, b, side, ignore_frac=0.1):
        pred = jax.random.normal(kp, (b, NUM_CLASSES, side, side), dtype=jnp.float32)
        tgt = jax.random.randint(kt, (b, side, side), 0, NUM_CLASSES, dtype=jnp.int32)
        tgt = jnp.where(jax.random.uniform(km, (b, side, side)) < ignore_frac,
                        IGNORE_INDEX, tgt)
        return pred, tgt

    # 1) Small module-consistent shape: B=2, C=2, 16x16 (lane-friendly, tiny-tile path).
    p1, t1 = make_case(keys[0], keys[1], keys[2], 2, 16)
    o1 = jax.block_until_ready(focal_loss_tpu(p1, t1))
    r1 = jax.block_until_ready(_focal_loss_ref(p1, t1))
    assert jnp.allclose(o1, r1, rtol=1e-4, atol=1e-6), (o1, r1)

    # 2) 32x32: lane-friendly, (8,128)-fold path, grid (2,1).
    p2, t2 = make_case(keys[3], keys[4], keys[5], 2, 32)
    o2 = jax.block_until_ready(focal_loss_tpu(p2, t2))
    r2 = jax.block_until_ready(_focal_loss_ref(p2, t2))
    assert jnp.allclose(o2, r2, rtol=1e-4, atol=1e-6), (o2, r2)

    # 3) 192x192 (rows-per-image 288 > CHUNK): multi-tile grid with a ragged, iota-masked
    #    final row tile (exercises the partial-sum + in-kernel tail-masking path).
    p3, t3 = make_case(keys[6], keys[7], keys[8], 1, 192)
    o3 = jax.block_until_ready(focal_loss_tpu(p3, t3))
    r3 = jax.block_until_ready(_focal_loss_ref(p3, t3))
    assert jnp.allclose(o3, r3, rtol=1e-4, atol=1e-6), (o3, r3)

    # 4) 18x18: H*W not a multiple of 128 -> padded fallback + ragged-lane masking.
    p4, t4 = make_case(keys[9], keys[10], keys[11], 2, 18)
    o4 = jax.block_until_ready(focal_loss_tpu(p4, t4))
    r4 = jax.block_until_ready(_focal_loss_ref(p4, t4))
    assert jnp.allclose(o4, r4, rtol=1e-4, atol=1e-6), (o4, r4)

    print("KERNEL_OK")
</pallas_src>

<mosaic_0001>
module attributes {stable_mosaic.version = 11 : i64} {
  func.func @kernel(%arg0: i32, %arg1: i32, %arg2: memref<1x1x2x128xf32, #tpu.memory_space<vmem>>, %arg3: memref<1x1x2x128xf32, #tpu.memory_space<vmem>>, %arg4: memref<1x2x128xi32, #tpu.memory_space<vmem>>, %arg5: memref<1x1x1x128xf32, #tpu.memory_space<vmem>>) attributes {dimension_semantics = [#tpu.dimension_semantics<parallel>, #tpu.dimension_semantics<parallel>], iteration_bounds = array<i64: 2, 1>, scalar_prefetch = 0 : i64, scratch_operands = 0 : i64, tpu.core_type = #tpu.core_type<tc>, window_params = [{transform_indices = @transform_0, window_bounds = array<i64: 1, 1, 2, 128>}, {transform_indices = @transform_1, window_bounds = array<i64: 1, 1, 2, 128>}, {transform_indices = @transform_2, window_bounds = array<i64: 1, 2, 128>}, {transform_indices = @transform_3, window_bounds = array<i64: 1, 1, 1, 128>}]} {
    %cst = arith.constant 0.000000e+00 : f32
    %0 = vector.broadcast %cst : f32 to vector<1x128xf32>
    %c0_i32 = arith.constant 0 : i32
    %c2_i32 = arith.constant 2 : i32
    %1 = arith.muli %c0_i32, %c2_i32 : i32
    %c0 = arith.constant 0 : index
    %c0_0 = arith.constant 0 : index
    %2 = arith.index_cast %1 : i32 to index
    %c0_1 = arith.constant 0 : index
    %3 = vector.load %arg2[%c0, %c0_0, %2, %c0_1] : memref<1x1x2x128xf32, #tpu.memory_space<vmem>>, vector<1x1x2x128xf32>
    %4 = vector.shape_cast %3 : vector<1x1x2x128xf32> to vector<2x128xf32>
    %c0_2 = arith.constant 0 : index
    %c0_3 = arith.constant 0 : index
    %5 = arith.index_cast %1 : i32 to index
    %c0_4 = arith.constant 0 : index
    %6 = vector.load %arg3[%c0_2, %c0_3, %5, %c0_4] : memref<1x1x2x128xf32, #tpu.memory_space<vmem>>, vector<1x1x2x128xf32>
    %7 = vector.shape_cast %6 : vector<1x1x2x128xf32> to vector<2x128xf32>
    %c0_5 = arith.constant 0 : index
    %8 = arith.index_cast %1 : i32 to index
    %c0_6 = arith.constant 0 : index
    %9 = vector.load %arg4[%c0_5, %8, %c0_6] : memref<1x2x128xi32, #tpu.memory_space<vmem>>, vector<1x2x128xi32>
    %10 = vector.shape_cast %9 : vector<1x2x128xi32> to vector<2x128xi32>
    %c-100_i32 = arith.constant -100 : i32
    %11 = vector.broadcast %c-100_i32 : i32 to vector<2x128xi32>
    %12 = arith.cmpi ne, %10, %11 : vector<2x128xi32>
    %13 = arith.subf %4, %7 : vector<2x128xf32>
    %cst_7 = arith.constant 5.000000e-01 : f32
    %14 = vector.broadcast %cst_7 : f32 to vector<2x128xf32>
    %15 = arith.mulf %14, %13 : vector<2x128xf32>
    %16 = math.tanh %15 : vector<2x128xf32>
    %cst_8 = arith.constant 0.000000e+00 : f32
    %17 = vector.broadcast %cst_8 : f32 to vector<2x128xf32>
    %18 = arith.select %12, %16, %17 : vector<2x128xi1>, vector<2x128xf32>
    %c1_i32 = arith.constant 1 : i32
    %19 = vector.broadcast %c1_i32 : i32 to vector<2x128xi32>
    %20 = arith.cmpi eq, %10, %19 : vector<2x128xi32>
    %cst_9 = arith.constant 0.000000e+00 : f32
    %21 = vector.broadcast %cst_9 : f32 to vector<2x128xf32>
    %22 = arith.subf %21, %18 : vector<2x128xf32>
    %23 = arith.select %20, %22, %18 : vector<2x128xi1>, vector<2x128xf32>
    %cst_10 = arith.constant 0.000000e+00 : f32
    %24 = vector.broadcast %cst_10 : f32 to vector<2x128xf32>
    %25 = arith.subf %24, %23 : vector<2x128xf32>
    %26 = math.exp %25 : vector<2x128xf32>
    %cst_11 = arith.constant 1.000000e+00 : f32
    %27 = vector.broadcast %cst_11 : f32 to vector<2x128xf32>
    %28 = arith.addf %27, %26 : vector<2x128xf32>
    %29 = arith.mulf %28, %28 : vector<2x128xf32>
    %30 = tpu.reciprocal %29 {approx = true} : vector<2x128xf32> -> vector<2x128xf32>
    %31 = arith.mulf %29, %30 : vector<2x128xf32>
    %cst_12 = arith.constant 2.000000e+00 : f32
    %32 = vector.broadcast %cst_12 : f32 to vector<2x128xf32>
    %33 = arith.subf %32, %31 : vector<2x128xf32>
    %34 = arith.mulf %30, %33 : vector<2x128xf32>
    %35 = arith.mulf %26, %26 : vector<2x128xf32>
    %cst_13 = arith.constant 2.500000e-01 : f32
    %36 = vector.broadcast %cst_13 : f32 to vector<2x128xf32>
    %37 = arith.mulf %36, %35 : vector<2x128xf32>
    %38 = math.log %28 : vector<2x128xf32>
    %39 = arith.mulf %37, %38 : vector<2x128xf32>
    %40 = arith.mulf %39, %34 : vector<2x128xf32>
    %cst_14 = arith.constant dense<0.000000e+00> : vector<128xf32>
    %41 = vector.multi_reduction <add>, %40, %cst_14 [0] : vector<2x128xf32> to vector<128xf32>
    %42 = vector.shape_cast %41 : vector<128xf32> to vector<1x128xf32>
    %43 = arith.addf %0, %42 : vector<1x128xf32>
    %c1_i32_15 = arith.constant 1 : i32
    %c0_16 = arith.constant 0 : index
    %c0_17 = arith.constant 0 : index
    %c0_18 = arith.constant 0 : index
    %c0_19 = arith.constant 0 : index
    %44 = vector.load %arg5[%c0_16, %c0_17, %c0_18, %c0_19] : memref<1x1x1x128xf32, #tpu.memory_space<vmem>>, vector<1x1x1x128xf32>
    %45 = vector.shape_cast %44 : vector<1x1x1x128xf32> to vector<1x128xf32>
    %46 = vector.shape_cast %43 : vector<1x128xf32> to vector<1x1x1x128xf32>
    tpu.vector_store %arg5[%c0_16, %c0_17, %c0_18, %c0_19], %46 {strides = array<i32>} : memref<1x1x1x128xf32, #tpu.memory_space<vmem>>, vector<1x1x1x128xf32>,
    return
  }
  func.func @transform_0(%arg0: i32, %arg1: i32) -> (i32, i32, i32, i32) {
    %c0_i32 = arith.constant 0 : i32
    %c0_i32_0 = arith.constant 0 : i32
    %c0_i32_1 = arith.constant 0 : i32
    return %arg0, %c0_i32, %arg1, %c0_i32_0 : i32, i32, i32, i32
  }
  func.func @transform_1(%arg0: i32, %arg1: i32) -> (i32, i32, i32, i32) {
    %c1_i32 = arith.constant 1 : i32
    %c0_i32 = arith.constant 0 : i32
    %c0_i32_0 = arith.constant 0 : i32
    return %arg0, %c1_i32, %arg1, %c0_i32 : i32, i32, i32, i32
  }
  func.func @transform_2(%arg0: i32, %arg1: i32) -> (i32, i32, i32) {
    %c0_i32 = arith.constant 0 : i32
    %c0_i32_0 = arith.constant 0 : i32
    return %arg0, %arg1, %c0_i32 : i32, i32, i32
  }
  func.func @transform_3(%arg0: i32, %arg1: i32) -> (i32, i32, i32, i32) {
    %c0_i32 = arith.constant 0 : i32
    %c0_i32_0 = arith.constant 0 : i32
    %c0_i32_1 = arith.constant 0 : i32
    return %arg0, %arg1, %c0_i32, %c0_i32_0 : i32, i32, i32, i32
  }
}

</mosaic_0001>

<llo_original>
// kernel: focal_loss_tpu.1
$region0: #{focal_loss_tpu.1}
  #allocation0 [shape = 'u32[]', space=smem, size = 0x4, offset = 0x4, fixed_abs, tag = 'smem constant byte address 0x4 - core index']
  #allocation1 [shape = 'u32[144,128]{1,0:T(1,128)}', space=vmem, size = 0x12000, scoped, tag = 'internal scratch']
  %s0 = inlined_call_operand.vmem [shape: f32[2,2,2,128], index: 0, kind: input, shape index: {}, may-alias: {0,1}]
  %s1 = inlined_call_operand.vmem [shape: f32[2,2,2,128], index: 1, kind: input, shape index: {}, may-alias: {0,1}]
  %s2 = inlined_call_operand.vmem [shape: s32[2,2,128], index: 2, kind: input, shape index: {}]
  %s3 = inlined_call_operand.vmem [shape: f32[2,1,1,128], index: 3, kind: output, shape index: {}]
  %s4 = sld [smem:[#allocation0]]
  $region45: #{focal_loss_tpu.1} parent=0
    _
  %s6 = ssub.s32 1, %s4
  %s7 = scalar_select 0, %s6, %s4
  loop: start=0, step=1, limit=4
  $region2: #{focal_loss_tpu.1} parent=0 // loop_pre_header
    _
  $region3: #{focal_loss_tpu.1} parent=0 // loop_header
    %s9 = sphi 0, %s13
    %p10 = scmp.ge.s32.totalorder %s9, 4
    %s16 = sphi 0, %s28
    %s17 = sphi 0, %s24
    %s18 = sphi 0, %s16
    %s19 = sphi 0, %s17
    %s20 = sphi 0, %s18
    %s21 = sphi 0, %s19
    %s33 = sphi 0, %s35
    %s36 = sphi 0, %s33
    %s37 = sphi 0, %s36
    %s53 = sphi 0, %s37
    %s61 = sphi 0, %s63
    %s64 = sphi 0, %s61
    %s65 = sphi 0, %s64
    %s81 = sphi 0, %s65
    %s89 = sphi 0, %s91
    %s92 = sphi 0, %s89
    %s93 = sphi 0, %s92
    %s109 = sphi 0, %s93
    %s117 = sphi 0, %s119
    %s120 = sphi 0, %s117
    %s121 = sphi 0, %s120
    %s137 = sphi 0, %s121
  $region4: #{focal_loss_tpu.1} parent=0 // loop_header_branch
    %12 = sbr.rel (%p10) target = $region8
  $region5: #{focal_loss_tpu.1} parent=0 // loop_body
    %s14 = ssub.s32 %s9, 1
    %s15 = ssub.s32 %s9, 2
    %s22 = sadd.s32 1, %s17
    %p23 = scmp.ge.s32.totalorder %s22, 1
    %s24 = scalar_select %p23, 0, %s22
    %s25 = sadd.s32 1, %s16
    %s26 = scalar_select %p23, %s25, %s16
    %p27 = scmp.ge.s32.totalorder %s26, 2
    %s28 = scalar_select %p27, 0, %s26
    %s29 = ssub.s32 %s16, %s28
    %s30 = ssub.s32 %s17, %s24
    %s31 = sor.u32 %s29, %s30
    %p32 = scmp.eq.s32.totalorder %s31, 0
    %s34 = sadd.s32 %s33, 1
    %s35 = scalar_select %p32, %s33, %s34
    %p38 = pneg %p32
    %p39 = scmp.eq.s32.totalorder %s9, 1
    %p40 = por %p38, %p39
    %p41 = scmp.ne.s32.totalorder %s33, %s36
    %p42 = scmp.eq.s32.totalorder %s9, 0
    %p43 = por %p41, %p42
    %p44 = scmp.ne.s32.totalorder %s33, %s36
    %p45 = scmp.eq.s32.totalorder %s14, 1
    %p46 = por %p44, %p45
    %p47 = scmp.ne.s32.totalorder %s36, %s37
    %p48 = scmp.eq.s32.totalorder %s14, 0
    %p49 = por %p47, %p48
    %p50 = scmp.ne.s32.totalorder %s36, %s37
    %p51 = scmp.eq.s32.totalorder %s15, 1
    %p52 = por %p50, %p51
    %p54 = scmp.ne.s32.totalorder %s37, %s53
    %p55 = scmp.eq.s32.totalorder %s15, 0
    %p56 = por %p54, %p55
    %s57 = ssub.s32 %s16, %s28
    %s58 = ssub.s32 %s17, %s24
    %s59 = sor.u32 %s57, %s58
    %p60 = scmp.eq.s32.totalorder %s59, 0
    %s62 = sadd.s32 %s61, 1
    %s63 = scalar_select %p60, %s61, %s62
    %p66 = pneg %p60
    %p67 = scmp.eq.s32.totalorder %s9, 1
    %p68 = por %p66, %p67
    %p69 = scmp.ne.s32.totalorder %s61, %s64
    %p70 = scmp.eq.s32.totalorder %s9, 0
    %p71 = por %p69, %p70
    %p72 = scmp.ne.s32.totalorder %s61, %s64
    %p73 = scmp.eq.s32.totalorder %s14, 1
    %p74 = por %p72, %p73
    %p75 = scmp.ne.s32.totalorder %s64, %s65
    %p76 = scmp.eq.s32.totalorder %s14, 0
    %p77 = por %p75, %p76
    %p78 = scmp.ne.s32.totalorder %s64, %s65
    %p79 = scmp.eq.s32.totalorder %s15, 1
    %p80 = por %p78, %p79
    %p82 = scmp.ne.s32.totalorder %s65, %s81
    %p83 = scmp.eq.s32.totalorder %s15, 0
    %p84 = por %p82, %p83
    %s85 = ssub.s32 %s16, %s28
    %s86 = ssub.s32 %s17, %s24
    %s87 = sor.u32 %s85, %s86
    %p88 = scmp.eq.s32.totalorder %s87, 0
    %s90 = sadd.s32 %s89, 1
    %s91 = scalar_select %p88, %s89, %s90
    %p94 = pneg %p88
    %p95 = scmp.eq.s32.totalorder %s9, 1
    %p96 = por %p94, %p95
    %p97 = scmp.ne.s32.totalorder %s89, %s92
    %p98 = scmp.eq.s32.totalorder %s9, 0
    %p99 = por %p97, %p98
    %p100 = scmp.ne.s32.totalorder %s89, %s92
    %p101 = scmp.eq.s32.totalorder %s14, 1
    %p102 = por %p100, %p101
    %p103 = scmp.ne.s32.totalorder %s92, %s93
    %p104 = scmp.eq.s32.totalorder %s14, 0
    %p105 = por %p103, %p104
    %p106 = scmp.ne.s32.totalorder %s92, %s93
    %p107 = scmp.eq.s32.totalorder %s15, 1
    %p108 = por %p106, %p107
    %p110 = scmp.ne.s32.totalorder %s93, %s109
    %p111 = scmp.eq.s32.totalorder %s15, 0
    %p112 = por %p110, %p111
    %s113 = ssub.s32 %s16, %s28
    %s114 = ssub.s32 %s17, %s24
    %s115 = sor.u32 %s113, %s114
    %p116 = scmp.eq.s32.totalorder %s115, 0
    %s118 = sadd.s32 %s117, 1
    %s119 = scalar_select %p116, %s117, %s118
    %p122 = pneg %p116
    %p123 = scmp.eq.s32.totalorder %s9, 1
    %p124 = por %p122, %p123
    %p125 = scmp.ne.s32.totalorder %s117, %s120
    %p126 = scmp.eq.s32.totalorder %s9, 0
    %p127 = por %p125, %p126
    %p128 = scmp.ne.s32.totalorder %s117, %s120
    %p129 = scmp.eq.s32.totalorder %s14, 1
    %p130 = por %p128, %p129
    %p131 = scmp.ne.s32.totalorder %s120, %s121
    %p132 = scmp.eq.s32.totalorder %s14, 0
    %p133 = por %p131, %p132
    %p134 = scmp.ne.s32.totalorder %s120, %s121
    %p135 = scmp.eq.s32.totalorder %s15, 1
    %p136 = por %p134, %p135
    %p138 = scmp.ne.s32.totalorder %s121, %s137
    %p139 = scmp.eq.s32.totalorder %s15, 0
    %p140 = por %p138, %p139
    %p141 = scmp.le.s32.totalorder 1, %s9
    %p142 = scmp.lt.s32.totalorder %s9, 3
    %p143 = pnand %p141, %p142
    %p144 = pneg %p143
    // Predicated region
    $region9: #{focal_loss_tpu.1} parent=5 // pred_check
      _
    $region10: #{focal_loss_tpu.1} parent=5 // pred_check_branch
      %146 = sbr.rel (%p143) target = $region12
    $region11: #{focal_loss_tpu.1} parent=5 // pred_region
      %s147 = ssub.s32 %s9, 1
    $region12: #{focal_loss_tpu.1} parent=5 // pred_fallthru
      _
    %p148 = scmp.lt.s32.totalorder %s9, 2
    // Predicated region
    $region13: #{focal_loss_tpu.1} parent=5 // pred_check
      %p149 = pneg %p148
    $region14: #{focal_loss_tpu.1} parent=5 // pred_check_branch
      %151 = sbr.rel (%p149) target = $region16
    $region15: #{focal_loss_tpu.1} parent=5 // pred_region
      // Predicated region
      $region17: #{focal_loss_tpu.1} parent=15 // pred_check
        %p152 = pneg %p43
      $region18: #{focal_loss_tpu.1} parent=15 // pred_check_branch
        %154 = sbr.rel (%p152) target = $region20
      $region19: #{focal_loss_tpu.1} parent=15 // pred_region
        %p155 = scmp.lt.s32.totalorder %s16, 1
        %s156 = scalar_select %p155, %s16, 1
        %p157 = scmp.lt.s32.totalorder %s17, 0
        %s158 = scalar_select %p157, %s17, 0
        %s159 = smul.addr %s156, 2
        %s160 = sadd.s32 %s158, %s159
        %s161 = smul.addr %s160, 2
        %s162 = scalar_lea.vmem %s0, %s161
      $region20: #{focal_loss_tpu.1} parent=15 // pred_fallthru
        _
      // Predicated region
      $region21: #{focal_loss_tpu.1} parent=15 // pred_check
        %p163 = pneg %p71
      $region22: #{focal_loss_tpu.1} parent=15 // pred_check_branch
        %165 = sbr.rel (%p163) target = $region24
      $region23: #{focal_loss_tpu.1} parent=15 // pred_region
        %p166 = scmp.lt.s32.totalorder %s16, 1
        %s167 = scalar_select %p166, %s16, 1
        %p168 = scmp.lt.s32.totalorder %s17, 0
        %s169 = scalar_select %p168, %s17, 0
        %s170 = sadd.s32 %s169, 1
        %s171 = smul.addr %s167, 2
        %s172 = sadd.s32 %s170, %s171
        %s173 = smul.addr %s172, 2
        %s174 = scalar_lea.vmem %s1, %s173
      $region24: #{focal_loss_tpu.1} parent=15 // pred_fallthru
        _
      // Predicated region
      $region25: #{focal_loss_tpu.1} parent=15 // pred_check
        %p175 = pneg %p99
      $region26: #{focal_loss_tpu.1} parent=15 // pred_check_branch
        %177 = sbr.rel (%p175) target = $region28
      $region27: #{focal_loss_tpu.1} parent=15 // pred_region
        %p178 = scmp.lt.s32.totalorder %s16, 1
        %s179 = scalar_select %p178, %s16, 1
        %p180 = scmp.lt.s32.totalorder %s17, 0
        %s181 = scalar_select %p180, %s17, 0
        %s182 = sadd.s32 %s181, %s179
        %s183 = smul.addr %s182, 2
        %s184 = scalar_lea.vmem %s2, %s183
      $region28: #{focal_loss_tpu.1} parent=15 // pred_fallthru
        _
    $region16: #{focal_loss_tpu.1} parent=5 // pred_fallthru
      _
    %p185 = scmp.le.s32.totalorder 1, %s9
    %p186 = scmp.lt.s32.totalorder %s9, 3
    %p187 = pnand %p185, %p186
    %p188 = pneg %p187
    // Predicated region
    $region29: #{focal_loss_tpu.1} parent=5 // pred_check
      _
    $region30: #{focal_loss_tpu.1} parent=5 // pred_check_branch
      %190 = sbr.rel (%p187) target = $region32
    $region31: #{focal_loss_tpu.1} parent=5 // pred_region
      %s191 = ssub.s32 %s9, 1
      %p192 = scmp.lt.s32.totalorder %s18, 1
      %s193 = scalar_select %p192, %s18, 1
      %p194 = scmp.lt.s32.totalorder %s19, 0
      %s195 = scalar_select %p194, %s19, 0
      %s196 = smul.addr %s193, 2
      %s197 = sadd.s32 %s195, %s196
      %s198 = smul.addr %s197, 2
      %s199 = scalar_lea.vmem %s0, %s198
      %p200 = pneg %p49
      %p201 = pneg %p46
      %p202 = scmp.lt.s32.totalorder %s18, 1
      %s203 = scalar_select %p202, %s18, 1
      %p204 = scmp.lt.s32.totalorder %s19, 0
      %s205 = scalar_select %p204, %s19, 0
      %s206 = sadd.s32 %s205, 1
      %s207 = smul.addr %s203, 2
      %s208 = sadd.s32 %s206, %s207
      %s209 = smul.addr %s208, 2
      %s210 = scalar_lea.vmem %s1, %s209
      %p211 = pneg %p77
      %p212 = pneg %p74
      %p213 = scmp.lt.s32.totalorder %s18, 1
      %s214 = scalar_select %p213, %s18, 1
      %p215 = scmp.lt.s32.totalorder %s19, 0
      %s216 = scalar_select %p215, %s19, 0
      %s217 = sadd.s32 %s216, %s214
      %s218 = smul.addr %s217, 2
      %s219 = scalar_lea.vmem %s2, %s218
      %p220 = pneg %p105
      %p221 = pneg %p102
      %p222 = pneg %p133
      %p223 = pneg %p130
      %p224 = scmp.lt.s32.totalorder %s18, 1
      %s225 = scalar_select %p224, %s18, 1
      %p226 = scmp.lt.s32.totalorder %s19, 0
      %s227 = scalar_select %p226, %s19, 0
      %s228 = sadd.s32 %s227, %s225
      %s229 = scalar_lea.vmem %s3, %s228
      %p230 = scmp.lt.s32.totalorder %s18, 1
      %s231 = scalar_select %p230, %s18, 1
      %p232 = scmp.lt.s32.totalorder %s19, 0
      %s233 = scalar_select %p232, %s19, 0
      %s234 = smul.addr %s231, 2
      %s235 = sadd.s32 %s233, %s234
      %s236 = smul.addr %s235, 2
      %s237 = scalar_lea.vmem %s0, %s236
      %p238 = scmp.lt.s32.totalorder %s18, 1
      %s239 = scalar_select %p238, %s18, 1
      %p240 = scmp.lt.s32.totalorder %s19, 0
      %s241 = scalar_select %p240, %s19, 0
      %s242 = sadd.s32 %s241, 1
      %s243 = smul.addr %s239, 2
      %s244 = sadd.s32 %s242, %s243
      %s245 = smul.addr %s244, 2
      %s246 = scalar_lea.vmem %s1, %s245
      %p247 = scmp.lt.s32.totalorder %s18, 1
      %s248 = scalar_select %p247, %s18, 1
      %p249 = scmp.lt.s32.totalorder %s19, 0
      %s250 = scalar_select %p249, %s19, 0
      %s251 = sadd.s32 %s250, %s248
      %s252 = smul.addr %s251, 2
      %s253 = scalar_lea.vmem %s2, %s252
      %p254 = scmp.lt.s32.totalorder %s18, 1
      %s255 = scalar_select %p254, %s18, 1
      %p256 = scmp.lt.s32.totalorder %s19, 0
      %s257 = scalar_select %p256, %s19, 0
      %s258 = sadd.s32 %s257, %s255
      %s259 = scalar_lea.vmem %s3, %s258
      %v260 = vld [vmem:[%s237] sm:$0x3]
      %v261 = vld [vmem:[%s246] sm:$0x3]
      %v262 = vld [vmem:[%s253] sm:$0x3]
      %vm263 = vcmp.ne.s32.totalorder %v262, 4294967196
      %v264 = vsub.f32 %v260, %v261
      %v265 = vmul.f32 %v264, 0.5
      %v266 = vtanh.pop %v265
      %v267 = vsel %vm263, %v266, 0.0
      %vm268 = vcmp.eq.s32.totalorder %v262, 1
      %v269 = vsub.f32 0.0, %v267
      %v270 = vsel %vm268, %v269, %v267
      %v271 = vsub.f32 0.0, %v270
      %v272 = vmul.f32 %v271, 1.442695
      %v273 = vpow.pop %v272
      %v274 = vadd.f32 %v273, 1.0
      %v275 = vmul.f32 %v274, %v274
      %v276 = vrcp.pop %v275
      %v277 = vmul.f32 %v275, %v276
      %v278 = vsub.f32 2.0, %v277
      %v279 = vmul.f32 %v276, %v278
      %v280 = vmul.f32 %v273, %v273
      %v281 = vmul.f32 %v280, 0.25
      %v282 = vlog2.pop %v274
      %v283 = vmul.f32 %v282, 0.6931472
      %v284 = vmul.f32 %v281, %v283
      %v285 = vmul.f32 %v284, %v279
      %vm286 = vcmask 1041408
      %v287 = vsel %vm286, %v285, 0.0
      %v288 = vrot.slane %v287, 4
      %v289 = vadd.f32 %v287, %v288
      %v290 = vrot.slane %v289, 2
      %v291 = vadd.f32 %v289, %v290
      %v292 = vrot.slane %v291, 1
      %v293 = vadd.f32 %v291, %v292
      %v294 = vadd.f32 %v293, 0.0
      %295 = vst [vmem:[%s259] sm:$0x1] %v294
      %p296 = scmp.lt.s32.totalorder %s18, 1
      %s297 = scalar_select %p296, %s18, 1
      %p298 = scmp.lt.s32.totalorder %s19, 0
      %s299 = scalar_select %p298, %s19, 0
      %s300 = sadd.s32 %s299, %s297
      %s301 = scalar_lea.vmem %s3, %s300
      // Predicated region
      $region33: #{focal_loss_tpu.1} parent=31 // pred_check
        %p302 = pneg %p130
      $region34: #{focal_loss_tpu.1} parent=31 // pred_check_branch
        %304 = sbr.rel (%p302) target = $region36
      $region35: #{focal_loss_tpu.1} parent=31 // pred_region
        _
      $region36: #{focal_loss_tpu.1} parent=31 // pred_fallthru
        _
    $region32: #{focal_loss_tpu.1} parent=5 // pred_fallthru
      _
    %p305 = scmp.le.s32.totalorder 2, %s9
    // Predicated region
    $region37: #{focal_loss_tpu.1} parent=5 // pred_check
      %p306 = pneg %p305
    $region38: #{focal_loss_tpu.1} parent=5 // pred_check_branch
      %308 = sbr.rel (%p306) target = $region40
    $region39: #{focal_loss_tpu.1} parent=5 // pred_region
      %s309 = ssub.s32 %s9, 2
      // Predicated region
      $region41: #{focal_loss_tpu.1} parent=39 // pred_check
        %p310 = pneg %p136
      $region42: #{focal_loss_tpu.1} parent=39 // pred_check_branch
        %312 = sbr.rel (%p310) target = $region44
      $region43: #{focal_loss_tpu.1} parent=39 // pred_region
        %p313 = scmp.lt.s32.totalorder %s20, 1
        %s314 = scalar_select %p313, %s20, 1
        %p315 = scmp.lt.s32.totalorder %s21, 0
        %s316 = scalar_select %p315, %s21, 0
        %s317 = sadd.s32 %s316, %s314
        %s318 = scalar_lea.vmem %s3, %s317
      $region44: #{focal_loss_tpu.1} parent=39 // pred_fallthru
        _
    $region40: #{focal_loss_tpu.1} parent=5 // pred_fallthru
      _
  $region6: #{focal_loss_tpu.1} parent=0 // loop_footer
    %s13 = sadd.s32 1, %s9
  $region7: #{focal_loss_tpu.1} parent=0 // loop_footer_branch
    %8 = sbr.rel target = $region3
  $region8: #{focal_loss_tpu.1} parent=0 // loop_exit
    _

</llo_original>
